<compile_context>
chip_gen: v7x
topology: tpu7x:2x2x1
jax: 0.10.0
libtpu: 0.0.40
codegen_flags: <defaults>
</compile_context>

<pallas_src>
import jax
import jax.numpy as jnp
from jax.experimental import pallas as pl
from jax.experimental.pallas import tpu as pltpu


def _make_divisible(v, divisor, min_value=None):
    if min_value is None:
        min_value = divisor
    new_v = max(min_value, int(v + divisor / 2) // divisor * divisor)
    if new_v < 0.9 * v:
        new_v += divisor
    return new_v


def _se_kernel(x_ref, w1_ref, b1_ref, w2_ref, b2_ref, out_ref):
    # One batch element per grid step.
    # x_ref / out_ref: (C, HW) -- channels on sublanes, lane-dense spatial slab on lanes.

    # Global average pool over the spatial (lane) axis, accumulated in f32 -> (C, 1).
    pooled = jnp.mean(x_ref[...].astype(jnp.float32), axis=-1, keepdims=True)

    # fc1 + ReLU: contract the channel axis (sublanes) via VPU multiply + sublane reduce.
    y1 = jnp.sum(pooled * w1_ref[...], axis=0, keepdims=True) + b1_ref[...]   # (1, Cse)
    y1 = jnp.maximum(y1, 0.0)

    # fc2: contract the reduced axis (lanes) via VPU multiply + lane reduce.
    y2 = jnp.sum(y1 * w2_ref[...], axis=-1, keepdims=True) + b2_ref[...]      # (C, 1)

    # h_sigmoid = relu6(y + 3) / 6, then per-channel rescale of the lane-dense slab.
    scale = jnp.clip(y2 + 3.0, 0.0, 6.0) * (1.0 / 6.0)

    # Re-read x from VMEM for the rescale: avoids keeping the whole slab live in vregs
    # across pool -> FC -> rescale at large block sizes (vld slots are otherwise idle).
    out_ref[...] = (x_ref[...].astype(jnp.float32) * scale).astype(out_ref.dtype)


def se_layer(x_nchw, w1, b1, w2, b2):
    """Fused SELayer forward.

    x_nchw: (B, C, H, W) like the PyTorch module.
    w1: (C, Cse)  == torch fc1.weight.T
    b1: (1, Cse)  == torch fc1.bias[None, :]
    w2: (C, Cse)  == torch fc2.weight          (out_features=C, in_features=Cse)
    b2: (C, 1)    == torch fc2.bias[:, None]
    """
    B, C, H, W = x_nchw.shape
    HW = H * W
    Cse = w1.shape[1]

    # Free contiguous view of NCHW; lane (minor) dim HW = 256 is a multiple of 128
    # so the output store is an unmasked, lane-dense vst.
    x3 = x_nchw.reshape(B, C, HW)

    itemsize = jnp.dtype(x_nchw.dtype).itemsize
    cost = pl.CostEstimate(
        flops=2 * B * C * HW + 4 * B * C * Cse,          # pool + rescale dominate; FCs negligible
        transcendentals=0,
        bytes_accessed=2 * B * C * HW * itemsize         # read x once, write out once
        + (2 * C * Cse + Cse + C) * 4,                   # tiny parameter traffic
    )

    out = pl.pallas_call(
        _se_kernel,
        out_shape=jax.ShapeDtypeStruct((B, C, HW), x_nchw.dtype),
        grid_spec=pltpu.PrefetchScalarGridSpec(
            num_scalar_prefetch=0,
            grid=(B,),                                    # one batch element per step, pipelined
            in_specs=[
                pl.BlockSpec((None, C, HW), lambda b: (b, 0, 0)),   # batch dim squeezed
                pl.BlockSpec((C, Cse), lambda b: (0, 0)),
                pl.BlockSpec((1, Cse), lambda b: (0, 0)),
                pl.BlockSpec((C, Cse), lambda b: (0, 0)),
                pl.BlockSpec((C, 1), lambda b: (0, 0)),
            ],
            out_specs=pl.BlockSpec((None, C, HW), lambda b: (b, 0, 0)),
        ),
        compiler_params=pltpu.CompilerParams(
            # Batch axis is fully independent -> shard across v7x's 2 TCs; no-op on v5e/v6e.
            dimension_semantics=("parallel",),
        ),
        cost_estimate=cost,
    )(x3, w1, b1, w2, b2)
    return out.reshape(B, C, H, W)


def reference(x, w1, b1, w2, b2):
    """Pure-JAX reference mirroring the PyTorch SELayer forward."""
    y = jnp.mean(x, axis=(2, 3))                   # (B, C) global avg pool
    y = jnp.maximum(y @ w1 + b1, 0.0)              # fc1 + ReLU        -> (B, Cse)
    y = y @ w2.T + b2[:, 0]                        # fc2               -> (B, C)
    y = jnp.clip(y + 3.0, 0.0, 6.0) / 6.0          # h_sigmoid
    return x * y[:, :, None, None]


if __name__ == "__main__":
    B, C, H, W = 2, 16, 16, 16
    Cse = _make_divisible(C // 4, 8)               # = 8

    key = jax.random.PRNGKey(0)
    k1, k2, k3, k4, kx = jax.random.split(key, 5)
    w1 = 0.3 * jax.random.normal(k1, (C, Cse), jnp.float32)   # fc1 weight^T
    b1 = 0.1 * jax.random.normal(k2, (1, Cse), jnp.float32)   # fc1 bias
    w2 = 0.3 * jax.random.normal(k3, (C, Cse), jnp.float32)   # fc2 weight (out=C, in=Cse)
    b2 = 0.1 * jax.random.normal(k4, (C, 1), jnp.float32)     # fc2 bias (column layout)
    x = jax.random.normal(kx, (B, C, H, W), jnp.float32)      # NCHW like PyTorch

    out = se_layer(x, w1, b1, w2, b2)
    out = jax.block_until_ready(out)

    ref = reference(x, w1, b1, w2, b2)
    assert out.shape == (B, C, H, W), out.shape
    err = float(jnp.max(jnp.abs(out - ref)))
    assert jnp.allclose(out, ref, atol=1e-5, rtol=1e-5), err
    print("KERNEL_OK")
</pallas_src>

<mosaic_0001>
module attributes {stable_mosaic.version = 11 : i64} {
  func.func @_se_kernel(%arg0: i32, %arg1: memref<1x16x256xf32, #tpu.memory_space<vmem>>, %arg2: memref<16x8xf32, #tpu.memory_space<vmem>>, %arg3: memref<1x8xf32, #tpu.memory_space<vmem>>, %arg4: memref<16x8xf32, #tpu.memory_space<vmem>>, %arg5: memref<16x1xf32, #tpu.memory_space<vmem>>, %arg6: memref<1x16x256xf32, #tpu.memory_space<vmem>>) attributes {dimension_semantics = [#tpu.dimension_semantics<parallel>], iteration_bounds = array<i64: 2>, scalar_prefetch = 0 : i64, scratch_operands = 0 : i64, tpu.core_type = #tpu.core_type<tc>, window_params = [{transform_indices = @transform_0, window_bounds = array<i64: 1, 16, 256>}, {pipeline_mode = #tpu.pipeline_mode<synchronous>, transform_indices = @transform_1, window_bounds = array<i64: 16, 8>}, {pipeline_mode = #tpu.pipeline_mode<synchronous>, transform_indices = @transform_2, window_bounds = array<i64: 1, 8>}, {pipeline_mode = #tpu.pipeline_mode<synchronous>, transform_indices = @transform_3, window_bounds = array<i64: 16, 8>}, {pipeline_mode = #tpu.pipeline_mode<synchronous>, transform_indices = @transform_4, window_bounds = array<i64: 16, 1>}, {transform_indices = @transform_5, window_bounds = array<i64: 1, 16, 256>}]} {
    %c0 = arith.constant 0 : index
    %c0_0 = arith.constant 0 : index
    %c0_1 = arith.constant 0 : index
    %0 = vector.load %arg1[%c0, %c0_0, %c0_1] : memref<1x16x256xf32, #tpu.memory_space<vmem>>, vector<1x16x256xf32>
    %1 = vector.shape_cast %0 : vector<1x16x256xf32> to vector<16x256xf32>
    %cst = arith.constant dense<0.000000e+00> : vector<16xf32>
    %2 = vector.multi_reduction <add>, %1, %cst [1] : vector<16x256xf32> to vector<16xf32>
    %3 = vector.shape_cast %2 : vector<16xf32> to vector<16x1xf32>
    %cst_2 = arith.constant 2.560000e+02 : f32
    %4 = vector.broadcast %cst_2 : f32 to vector<16x1xf32>
    %5 = arith.divf %3, %4 : vector<16x1xf32>
    %c0_3 = arith.constant 0 : index
    %c0_4 = arith.constant 0 : index
    %6 = vector.load %arg2[%c0_3, %c0_4] : memref<16x8xf32, #tpu.memory_space<vmem>>, vector<16x8xf32>
    %7 = vector.broadcast %5 : vector<16x1xf32> to vector<16x8xf32>
    %8 = arith.mulf %7, %6 : vector<16x8xf32>
    %cst_5 = arith.constant dense<0.000000e+00> : vector<8xf32>
    %9 = vector.multi_reduction <add>, %8, %cst_5 [0] : vector<16x8xf32> to vector<8xf32>
    %10 = vector.shape_cast %9 : vector<8xf32> to vector<1x8xf32>
    %c0_6 = arith.constant 0 : index
    %c0_7 = arith.constant 0 : index
    %11 = vector.load %arg3[%c0_6, %c0_7] : memref<1x8xf32, #tpu.memory_space<vmem>>, vector<1x8xf32>
    %12 = arith.addf %10, %11 : vector<1x8xf32>
    %cst_8 = arith.constant 0.000000e+00 : f32
    %13 = vector.broadcast %cst_8 : f32 to vector<1x8xf32>
    %14 = arith.maximumf %12, %13 : vector<1x8xf32>
    %c0_9 = arith.constant 0 : index
    %c0_10 = arith.constant 0 : index
    %15 = vector.load %arg4[%c0_9, %c0_10] : memref<16x8xf32, #tpu.memory_space<vmem>>, vector<16x8xf32>
    %16 = vector.broadcast %14 : vector<1x8xf32> to vector<16x8xf32>
    %17 = arith.mulf %16, %15 : vector<16x8xf32>
    %cst_11 = arith.constant dense<0.000000e+00> : vector<16xf32>
    %18 = vector.multi_reduction <add>, %17, %cst_11 [1] : vector<16x8xf32> to vector<16xf32>
    %19 = vector.shape_cast %18 : vector<16xf32> to vector<16x1xf32>
    %c0_12 = arith.constant 0 : index
    %c0_13 = arith.constant 0 : index
    %20 = vector.load %arg5[%c0_12, %c0_13] : memref<16x1xf32, #tpu.memory_space<vmem>>, vector<16x1xf32>
    %21 = arith.addf %19, %20 : vector<16x1xf32>
    %cst_14 = arith.constant 3.000000e+00 : f32
    %22 = vector.broadcast %cst_14 : f32 to vector<16x1xf32>
    %23 = arith.addf %21, %22 : vector<16x1xf32>
    %cst_15 = arith.constant 0.000000e+00 : f32
    %cst_16 = arith.constant 6.000000e+00 : f32
    %24 = vector.broadcast %cst_15 : f32 to vector<16x1xf32>
    %25 = arith.maximumf %24, %23 : vector<16x1xf32>
    %26 = vector.broadcast %cst_16 : f32 to vector<16x1xf32>
    %27 = arith.minimumf %26, %25 : vector<16x1xf32>
    %cst_17 = arith.constant 0.166666672 : f32
    %28 = vector.broadcast %cst_17 : f32 to vector<16x1xf32>
    %29 = arith.mulf %27, %28 : vector<16x1xf32>
    %c0_18 = arith.constant 0 : index
    %c0_19 = arith.constant 0 : index
    %c0_20 = arith.constant 0 : index
    %30 = vector.load %arg1[%c0_18, %c0_19, %c0_20] : memref<1x16x256xf32, #tpu.memory_space<vmem>>, vector<1x16x256xf32>
    %31 = vector.shape_cast %30 : vector<1x16x256xf32> to vector<16x256xf32>
    %32 = vector.broadcast %29 : vector<16x1xf32> to vector<16x256xf32>
    %33 = arith.mulf %31, %32 : vector<16x256xf32>
    %c0_21 = arith.constant 0 : index
    %c0_22 = arith.constant 0 : index
    %c0_23 = arith.constant 0 : index
    %34 = vector.load %arg6[%c0_21, %c0_22, %c0_23] : memref<1x16x256xf32, #tpu.memory_space<vmem>>, vector<1x16x256xf32>
    %35 = vector.shape_cast %34 : vector<1x16x256xf32> to vector<16x256xf32>
    %36 = vector.shape_cast %33 : vector<16x256xf32> to vector<1x16x256xf32>
    tpu.vector_store %arg6[%c0_21, %c0_22, %c0_23], %36 {strides = array<i32>} : memref<1x16x256xf32, #tpu.memory_space<vmem>>, vector<1x16x256xf32>,
    return
  }
  func.func @transform_0(%arg0: i32) -> (i32, i32, i32) {
    %c0_i32 = arith.constant 0 : i32
    %c0_i32_0 = arith.constant 0 : i32
    %c0_i32_1 = arith.constant 0 : i32
    return %arg0, %c0_i32, %c0_i32_0 : i32, i32, i32
  }
  func.func @transform_1(%arg0: i32) -> (i32, i32) {
    %c0_i32 = arith.constant 0 : i32
    %c0_i32_0 = arith.constant 0 : i32
    %c0_i32_1 = arith.constant 0 : i32
    return %c0_i32, %c0_i32_0 : i32, i32
  }
  func.func @transform_2(%arg0: i32) -> (i32, i32) {
    %c0_i32 = arith.constant 0 : i32
    %c0_i32_0 = arith.constant 0 : i32
    %c0_i32_1 = arith.constant 0 : i32
    return %c0_i32, %c0_i32_0 : i32, i32
  }
  func.func @transform_3(%arg0: i32) -> (i32, i32) {
    %c0_i32 = arith.constant 0 : i32
    %c0_i32_0 = arith.constant 0 : i32
    %c0_i32_1 = arith.constant 0 : i32
    return %c0_i32, %c0_i32_0 : i32, i32
  }
  func.func @transform_4(%arg0: i32) -> (i32, i32) {
    %c0_i32 = arith.constant 0 : i32
    %c0_i32_0 = arith.constant 0 : i32
    %c0_i32_1 = arith.constant 0 : i32
    return %c0_i32, %c0_i32_0 : i32, i32
  }
  func.func @transform_5(%arg0: i32) -> (i32, i32, i32) {
    %c0_i32 = arith.constant 0 : i32
    %c0_i32_0 = arith.constant 0 : i32
    %c0_i32_1 = arith.constant 0 : i32
    return %arg0, %c0_i32, %c0_i32_0 : i32, i32, i32
  }
}

</mosaic_0001>

<llo_original>
// kernel: tpu_custom_call.1
$region0: #{tpu_custom_call.1}
  #allocation0 [shape = 'u32[]', space=smem, size = 0x4, offset = 0x4, fixed_abs, tag = 'smem constant byte address 0x4 - core index']
  #allocation1 [shape = 'u32[144,128]{1,0:T(1,128)}', space=vmem, size = 0x12000, scoped, tag = 'internal scratch']
  %s0 = inlined_call_operand.vmem [shape: f32[2,16,256], index: 0, kind: input, shape index: {}]
  %s1 = inlined_call_operand.vmem [shape: f32[16,8], index: 1, kind: input, shape index: {}]
  %s2 = inlined_call_operand.hbm [shape: f32[1,8], index: 2, kind: input, shape index: {}]
  %s3 = inlined_call_operand.vmem [shape: f32[16,8], index: 3, kind: input, shape index: {}]
  %s4 = inlined_call_operand.vmem [shape: f32[16,1], index: 4, kind: input, shape index: {}]
  %s5 = inlined_call_operand.hbm [shape: f32[2,16,256], index: 5, kind: output, shape index: {}]
  %s6 = sld [smem:[#allocation0]]
  $region57: #{tpu_custom_call.1} parent=0
    _
  %s8 = ssub.s32 1, %s6
  %s9 = scalar_select 0, %s8, %s6
  $region1: #{tpu_custom_call.1} parent=0
    #allocation2 [shape = 'u8[512]{0}', space=vmem, size = 0x400, scoped, tag = 'input window, operand 2, single buffered']
    #allocation3 [shape = 's32[2]{0}', space=sflag, size = 0x8, scoped, tag = 'scoped memory for tpu_custom_call.1']
    #allocation4 [shape = 's32[2]{0}', space=sflag, size = 0x8, scoped, tag = 'scoped memory for tpu_custom_call.1']
    #allocation5 [shape = 'u8[32768]{0}', space=vmem, size = 0x8000, scoped, tag = 'output window, operand 0']
    %10 = vsyncpa [#allocation3], 0
    %11 = vsyncpa [#allocation4], 0
    %s12 = scalar_lea.sflag [#allocation4], 1
    %13 = vsyncpa %s12, 0
    loop: start=0, step=1, limit=4
    $region2: #{tpu_custom_call.1} parent=1 // loop_pre_header
      _
    $region3: #{tpu_custom_call.1} parent=1 // loop_header
      %s15 = sphi 0, %s19
      %p16 = scmp.ge.s32.totalorder %s15, 4
      %s25 = sphi 0, %s27
      %s28 = sphi 0, %s25
      %s29 = sphi 0, %s28
      %s45 = sphi 0, %s29
      %s49 = sphi 0, %s49
      %s51 = sphi 0, %s49
      %s52 = sphi 0, %s51
      %s66 = sphi 0, %s52
      %s70 = sphi 0, %s70
      %s72 = sphi 0, %s70
      %s73 = sphi 0, %s72
      %s87 = sphi 0, %s73
      %s91 = sphi 0, %s91
      %s93 = sphi 0, %s91
      %s94 = sphi 0, %s93
      %s108 = sphi 0, %s94
      %s112 = sphi 0, %s112
      %s114 = sphi 0, %s112
      %s115 = sphi 0, %s114
      %s129 = sphi 0, %s115
      %s135 = sphi 0, %s137
      %s138 = sphi 0, %s135
      %s139 = sphi 0, %s138
      %s155 = sphi 0, %s139
    $region4: #{tpu_custom_call.1} parent=1 // loop_header_branch
      %18 = sbr.rel (%p16) target = $region8
    $region5: #{tpu_custom_call.1} parent=1 // loop_body
      %s20 = ssub.s32 %s15, 1
      %s21 = ssub.s32 %s15, 2
      %s22 = sadd.s32 %s15, 1
      %s23 = ssub.s32 %s15, %s22
      %p24 = scmp.eq.s32.totalorder %s23, 0
      %s26 = sadd.s32 %s25, 1
      %s27 = scalar_select %p24, %s25, %s26
      %p30 = pneg %p24
      %p31 = scmp.eq.s32.totalorder %s15, 1
      %p32 = por %p30, %p31
      %p33 = scmp.ne.s32.totalorder %s25, %s28
      %p34 = scmp.eq.s32.totalorder %s15, 0
      %p35 = por %p33, %p34
      %p36 = scmp.ne.s32.totalorder %s25, %s28
      %p37 = scmp.eq.s32.totalorder %s20, 1
      %p38 = por %p36, %p37
      %p39 = scmp.ne.s32.totalorder %s28, %s29
      %p40 = scmp.eq.s32.totalorder %s20, 0
      %p41 = por %p39, %p40
      %p42 = scmp.ne.s32.totalorder %s28, %s29
      %p43 = scmp.eq.s32.totalorder %s21, 1
      %p44 = por %p42, %p43
      %p46 = scmp.ne.s32.totalorder %s29, %s45
      %p47 = scmp.eq.s32.totalorder %s21, 0
      %p48 = por %p46, %p47
      %s50 = sadd.s32 %s49, 1
      %p53 = scmp.eq.s32.totalorder %s15, 1
      %p54 = scmp.ne.s32.totalorder %s49, %s51
      %p55 = scmp.eq.s32.totalorder %s15, 0
      %p56 = por %p54, %p55
      %p57 = scmp.ne.s32.totalorder %s49, %s51
      %p58 = scmp.eq.s32.totalorder %s20, 1
      %p59 = por %p57, %p58
      %p60 = scmp.ne.s32.totalorder %s51, %s52
      %p61 = scmp.eq.s32.totalorder %s20, 0
      %p62 = por %p60, %p61
      %p63 = scmp.ne.s32.totalorder %s51, %s52
      %p64 = scmp.eq.s32.totalorder %s21, 1
      %p65 = por %p63, %p64
      %p67 = scmp.ne.s32.totalorder %s52, %s66
      %p68 = scmp.eq.s32.totalorder %s21, 0
      %p69 = por %p67, %p68
      %s71 = sadd.s32 %s70, 1
      %p74 = scmp.eq.s32.totalorder %s15, 1
      %p75 = scmp.ne.s32.totalorder %s70, %s72
      %p76 = scmp.eq.s32.totalorder %s15, 0
      %p77 = por %p75, %p76
      %p78 = scmp.ne.s32.totalorder %s70, %s72
      %p79 = scmp.eq.s32.totalorder %s20, 1
      %p80 = por %p78, %p79
      %p81 = scmp.ne.s32.totalorder %s72, %s73
      %p82 = scmp.eq.s32.totalorder %s20, 0
      %p83 = por %p81, %p82
      %p84 = scmp.ne.s32.totalorder %s72, %s73
      %p85 = scmp.eq.s32.totalorder %s21, 1
      %p86 = por %p84, %p85
      %p88 = scmp.ne.s32.totalorder %s73, %s87
      %p89 = scmp.eq.s32.totalorder %s21, 0
      %p90 = por %p88, %p89
      %s92 = sadd.s32 %s91, 1
      %p95 = scmp.eq.s32.totalorder %s15, 1
      %p96 = scmp.ne.s32.totalorder %s91, %s93
      %p97 = scmp.eq.s32.totalorder %s15, 0
      %p98 = por %p96, %p97
      %p99 = scmp.ne.s32.totalorder %s91, %s93
      %p100 = scmp.eq.s32.totalorder %s20, 1
      %p101 = por %p99, %p100
      %p102 = scmp.ne.s32.totalorder %s93, %s94
      %p103 = scmp.eq.s32.totalorder %s20, 0
      %p104 = por %p102, %p103
      %p105 = scmp.ne.s32.totalorder %s93, %s94
      %p106 = scmp.eq.s32.totalorder %s21, 1
      %p107 = por %p105, %p106
      %p109 = scmp.ne.s32.totalorder %s94, %s108
      %p110 = scmp.eq.s32.totalorder %s21, 0
      %p111 = por %p109, %p110
      %s113 = sadd.s32 %s112, 1
      %p116 = scmp.eq.s32.totalorder %s15, 1
      %p117 = scmp.ne.s32.totalorder %s112, %s114
      %p118 = scmp.eq.s32.totalorder %s15, 0
      %p119 = por %p117, %p118
      %p120 = scmp.ne.s32.totalorder %s112, %s114
      %p121 = scmp.eq.s32.totalorder %s20, 1
      %p122 = por %p120, %p121
      %p123 = scmp.ne.s32.totalorder %s114, %s115
      %p124 = scmp.eq.s32.totalorder %s20, 0
      %p125 = por %p123, %p124
      %p126 = scmp.ne.s32.totalorder %s114, %s115
      %p127 = scmp.eq.s32.totalorder %s21, 1
      %p128 = por %p126, %p127
      %p130 = scmp.ne.s32.totalorder %s115, %s129
      %p131 = scmp.eq.s32.totalorder %s21, 0
      %p132 = por %p130, %p131
      %s133 = ssub.s32 %s15, %s22
      %p134 = scmp.eq.s32.totalorder %s133, 0
      %s136 = sadd.s32 %s135, 1
      %s137 = scalar_select %p134, %s135, %s136
      %p140 = pneg %p134
      %p141 = scmp.eq.s32.totalorder %s15, 1
      %p142 = por %p140, %p141
      %p143 = scmp.ne.s32.totalorder %s135, %s138
      %p144 = scmp.eq.s32.totalorder %s15, 0
      %p145 = por %p143, %p144
      %p146 = scmp.ne.s32.totalorder %s135, %s138
      %p147 = scmp.eq.s32.totalorder %s20, 1
      %p148 = por %p146, %p147
      %p149 = scmp.ne.s32.totalorder %s138, %s139
      %p150 = scmp.eq.s32.totalorder %s20, 0
      %p151 = por %p149, %p150
      %p152 = scmp.ne.s32.totalorder %s138, %s139
      %p153 = scmp.eq.s32.totalorder %s21, 1
      %p154 = por %p152, %p153
      %p156 = scmp.ne.s32.totalorder %s139, %s155
      %p157 = scmp.eq.s32.totalorder %s21, 0
      %p158 = por %p156, %p157
      %p159 = scmp.le.s32.totalorder 1, %s15
      %p160 = scmp.lt.s32.totalorder %s15, 3
      %p161 = pnand %p159, %p160
      %p162 = pneg %p161
      // Predicated region
      $region9: #{tpu_custom_call.1} parent=5 // pred_check
        _
      $region10: #{tpu_custom_call.1} parent=5 // pred_check_branch
        %164 = sbr.rel (%p161) target = $region12
      $region11: #{tpu_custom_call.1} parent=5 // pred_region
        %s165 = ssub.s32 %s15, 1
        // Predicated region
        $region13: #{tpu_custom_call.1} parent=11 // pred_check
          %p166 = pneg %p62
        $region14: #{tpu_custom_call.1} parent=11 // pred_check_branch
          %168 = sbr.rel (%p166) target = $region16
        $region15: #{tpu_custom_call.1} parent=11 // pred_region
          _
        $region16: #{tpu_custom_call.1} parent=11 // pred_fallthru
          _
        // Predicated region
        $region17: #{tpu_custom_call.1} parent=11 // pred_check
          %p169 = pneg %p83
        $region18: #{tpu_custom_call.1} parent=11 // pred_check_branch
          %171 = sbr.rel (%p169) target = $region20
        $region19: #{tpu_custom_call.1} parent=11 // pred_region
          %s173 = ssub.s32 16, 16
          %174 = vsyncadd [#allocation3], %s173
          %s176 = sshll.u32 [#allocation2], 4
          %s177 = int_to_ptr.vmem [resolvable:$true] %s176
          %179 = dma.hbm_to_vmem [thread:$0]  %s2, 16, %s177, [#allocation3]
        $region20: #{tpu_custom_call.1} parent=11 // pred_fallthru
          _
        // Predicated region
        $region21: #{tpu_custom_call.1} parent=11 // pred_check
          %p180 = pneg %p104
        $region22: #{tpu_custom_call.1} parent=11 // pred_check_branch
          %182 = sbr.rel (%p180) target = $region24
        $region23: #{tpu_custom_call.1} parent=11 // pred_region
          _
        $region24: #{tpu_custom_call.1} parent=11 // pred_fallthru
          _
        // Predicated region
        $region25: #{tpu_custom_call.1} parent=11 // pred_check
          %p183 = pneg %p125
        $region26: #{tpu_custom_call.1} parent=11 // pred_check_branch
          %185 = sbr.rel (%p183) target = $region28
        $region27: #{tpu_custom_call.1} parent=11 // pred_region
          _
        $region28: #{tpu_custom_call.1} parent=11 // pred_fallthru
          _
      $region12: #{tpu_custom_call.1} parent=5 // pred_fallthru
        _
      %p186 = scmp.lt.s32.totalorder %s15, 2
      // Predicated region
      $region29: #{tpu_custom_call.1} parent=5 // pred_check
        %p187 = pneg %p186
      $region30: #{tpu_custom_call.1} parent=5 // pred_check_branch
        %189 = sbr.rel (%p187) target = $region32
      $region31: #{tpu_custom_call.1} parent=5 // pred_region
        // Predicated region
        $region33: #{tpu_custom_call.1} parent=31 // pred_check
          %p190 = pneg %p35
        $region34: #{tpu_custom_call.1} parent=31 // pred_check_branch
          %192 = sbr.rel (%p190) target = $region36
        $region35: #{tpu_custom_call.1} parent=31 // pred_region
          %p193 = scmp.lt.s32.totalorder %s15, 1
          %s194 = scalar_select %p193, %s15, 1
          %s195 = smul.addr %s194, 4
          %s196 = smul.addr %s195, 8
          %s197 = scalar_lea.vmem %s0, %s196
        $region36: #{tpu_custom_call.1} parent=31 // pred_fallthru
          _
      $region32: #{tpu_custom_call.1} parent=5 // pred_fallthru
        _
      %p198 = scmp.le.s32.totalorder 1, %s15
      %p199 = scmp.lt.s32.totalorder %s15, 3
      %p200 = pnand %p198, %p199
      %p201 = pneg %p200
      // Predicated region
      $region37: #{tpu_custom_call.1} parent=5 // pred_check
        _
      $region38: #{tpu_custom_call.1} parent=5 // pred_check_branch
        %203 = sbr.rel (%p200) target = $region40
      $region39: #{tpu_custom_call.1} parent=5 // pred_region
        %s204 = ssub.s32 %s15, 1
        // Predicated region
        $region41: #{tpu_custom_call.1} parent=39 // pred_check
          %p205 = pneg %p83
        $region42: #{tpu_custom_call.1} parent=39 // pred_check_branch
          %207 = sbr.rel (%p205) target = $region44
        $region43: #{tpu_custom_call.1} parent=39 // pred_region
          %208 = dma.done [#allocation3], 16
        $region44: #{tpu_custom_call.1} parent=39 // pred_fallthru
          _
        %p209 = scmp.lt.s32.totalorder %s20, 1
        %s210 = scalar_select %p209, %s20, 1
        %s211 = smul.addr %s210, 4
        %s212 = smul.addr %s211, 8
        %s213 = scalar_lea.vmem %s0, %s212
        %p214 = pneg %p41
        %p215 = pneg %p38
        %p216 = pneg %p62
        %p217 = pneg %p59
        %p218 = pneg %p83
        %p219 = pneg %p80
        %p220 = pneg %p104
        %p221 = pneg %p101
        %p222 = pneg %p125
        %p223 = pneg %p122
        %p224 = pneg %p151
        %p225 = pneg %p148
        %s226 = sand.u32 %s138, 1
        %s227 = scalar_lea.sflag [#allocation4], %s226
        %s228 = sand.u32 %s138, 1
        %s229 = smul.addr %s228, 32
        %s230 = scalar_lea.vmem [#allocation5], %s229
        %p231 = scmp.lt.s32.totalorder %s20, 1
        %s232 = scalar_select %p231, %s20, 1
        %s233 = smul.addr %s232, 4
        %s234 = smul.addr %s233, 8
        %s235 = scalar_lea.vmem %s0, %s234
        %v236 = vld [vmem:[%s235] sm:$0xff]
        %v237 = vld [vmem:[%s235 + $0x8] sm:$0xff]
        %v238 = vld [vmem:[%s235 + $0x10] sm:$0xff]
        %v239 = vld [vmem:[%s235 + $0x18] sm:$0xff]
        %v240 = vadd.f32 %v236, %v237
        %241 = vadd.xlane.f32.xlu0 %v240
        %v242 = vpop.xlane.xlu0 %241
        %v243 = vadd.f32 %v238, %v239
        %244 = vadd.xlane.f32.xlu0 %v243
        %v245 = vpop.xlane.xlu0 %244
        %v246 = vrcp.pop 256.0
        %v247 = vmul.f32 %v242, %v246
        %v248 = vmul.f32 %v245, %v246
        %v249 = vld [vmem:[%s1] sm:$0xff]
        %v250 = vld [vmem:[%s1 + $0x8] sm:$0xff]
        %v251 = vmul.f32 %v247, %v249
        %v252 = vmul.f32 %v248, %v250
        %vm253 = vcmask 64512
        %v254 = vsel %vm253, %v251, 0.0
        %v255 = vsel %vm253, %v252, 0.0
        %v256 = vadd.f32 %v254, %v255
        %v257 = vrot.slane %v256, 4
        %v258 = vadd.f32 %v256, %v257
        %v259 = vrot.slane %v258, 2
        %v260 = vadd.f32 %v258, %v259
        %v261 = vrot.slane %v260, 1
        %v262 = vadd.f32 %v260, %v261
        %v263 = vld [vmem:[#allocation2] sm:$0x1]
        %v264 = vadd.f32 %v262, %v263
        %v265 = vmax.f32 %v264, 0.0
        %v266 = vld [vmem:[%s3] sm:$0xff]
        %v267 = vld [vmem:[%s3 + $0x8] sm:$0xff]
        %v268 = vlaneseq
        %v269 = vshrl.u32 %v268, 7
        %v270 = vsub.s32 0, %v269
        %v271 = vrot.slane %v265, %v270
        %v272 = vmul.f32 %v271, %v266
        %v273 = vmul.f32 %v271, %v267
        %v274 = vsel %vm253, %v272, 0.0
        %275 = vadd.xlane.f32.xlu0 %v274
        %v276 = vpop.xlane.xlu0 %275
        %v277 = vsel %vm253, %v273, 0.0
        %278 = vadd.xlane.f32.xlu0 %v277
        %v279 = vpop.xlane.xlu0 %278
        %v280 = vld [vmem:[%s4] sm:$0xff]
        %v281 = vld [vmem:[%s4 + $0x8] sm:$0xff]
        %v282 = vadd.f32 %v276, %v280
        %v283 = vadd.f32 %v279, %v281
        %v284 = vadd.f32 %v282, 3.0
        %v285 = vadd.f32 %v283, 3.0
        %v286 = vmax.f32 %v284, 0.0
        %v287 = vmax.f32 %v285, 0.0
        %v288 = vmin.f32 %v286, 6.0
        %v289 = vmin.f32 %v287, 6.0
        %v290 = vmul.f32 %v288, 0.16666667
        %v291 = vmul.f32 %v289, 0.16666667
        %293 = vset.pattern.permute.xlu0 0
        %294 = vperm.xlu0 %293, %v290
        %v295 = vpop.permute.xlu0 %294
        %298 = vset.pattern.permute.xlu0 0
        %299 = vperm.xlu0 %298, %v291
        %v300 = vpop.permute.xlu0 %299
        %v302 = vmul.f32 %v236, %v295
        %v303 = vmul.f32 %v237, %v295
        %v304 = vmul.f32 %v238, %v300
        %v305 = vmul.f32 %v239, %v300
        %306 = vst [vmem:[%s230] sm:$0xff] %v302
        %307 = vst [vmem:[%s230 + $0x8] sm:$0xff] %v303
        %308 = vst [vmem:[%s230 + $0x10] sm:$0xff] %v304
        %309 = vst [vmem:[%s230 + $0x18] sm:$0xff] %v305
        %s310 = sand.u32 %s138, 1
        %s311 = scalar_lea.sflag [#allocation4], %s310
        %s312 = sand.u32 %s138, 1
        %s313 = smul.addr %s312, 32
        %s314 = scalar_lea.vmem [#allocation5], %s313
        // Predicated region
        $region45: #{tpu_custom_call.1} parent=39 // pred_check
          %p315 = pneg %p148
        $region46: #{tpu_custom_call.1} parent=39 // pred_check_branch
          %317 = sbr.rel (%p315) target = $region48
        $region47: #{tpu_custom_call.1} parent=39 // pred_region
          %s319 = ssub.s32 512, 512
          %320 = vsyncadd %s311, %s319
          %s321 = smul.addr %s20, 4
          %s322 = smul.addr %s321, 128
          %s323 = scalar_lea.hbm %s5, %s322
          %s324 = sshll.u32 %s314, 4
          %s325 = int_to_ptr.vmem [resolvable:$true] %s324
          %330 = dma.vmem_to_hbm [thread:$0]  %s325, 512, %s323, %s311, 256, 256, 16
        $region48: #{tpu_custom_call.1} parent=39 // pred_fallthru
          _
      $region40: #{tpu_custom_call.1} parent=5 // pred_fallthru
        _
      %p331 = scmp.le.s32.totalorder 2, %s15
      // Predicated region
      $region49: #{tpu_custom_call.1} parent=5 // pred_check
        %p332 = pneg %p331
      $region50: #{tpu_custom_call.1} parent=5 // pred_check_branch
        %334 = sbr.rel (%p332) target = $region52
      $region51: #{tpu_custom_call.1} parent=5 // pred_region
        %s335 = ssub.s32 %s15, 2
        // Predicated region
        $region53: #{tpu_custom_call.1} parent=51 // pred_check
          %p336 = pneg %p154
        $region54: #{tpu_custom_call.1} parent=51 // pred_check_branch
          %338 = sbr.rel (%p336) target = $region56
        $region55: #{tpu_custom_call.1} parent=51 // pred_region
          %s339 = sand.u32 %s139, 1
          %s340 = scalar_lea.sflag [#allocation4], %s339
          %s341 = sand.u32 %s139, 1
          %s342 = smul.addr %s341, 32
          %s343 = scalar_lea.vmem [#allocation5], %s342
          %344 = dma.done %s340, 512
        $region56: #{tpu_custom_call.1} parent=51 // pred_fallthru
          _
      $region52: #{tpu_custom_call.1} parent=5 // pred_fallthru
        _
    $region6: #{tpu_custom_call.1} parent=1 // loop_footer
      %s19 = sadd.s32 1, %s15
    $region7: #{tpu_custom_call.1} parent=1 // loop_footer_branch
      %14 = sbr.rel target = $region3
    $region8: #{tpu_custom_call.1} parent=1 // loop_exit
      _
    %345 = vsyncpa [#allocation3], 1
    %s346 = scalar_lea.sflag [#allocation3], 1
    %347 = vsyncpa %s346, 1
    %348 = vsyncpa [#allocation4], 1
    %s349 = scalar_lea.sflag [#allocation4], 1
    %350 = vsyncpa %s349, 1

</llo_original>
